<compile_context>
chip_gen: v6e
topology: v6e:2x2x1
jax: 0.10.0
libtpu: 0.0.40
codegen_flags: <defaults>
</compile_context>

<pallas_src>
import functools

import jax
import jax.numpy as jnp
from jax import lax
from jax.experimental import pallas as pl
from jax.experimental.pallas import tpu as pltpu


def _point_attention_kernel(x_ref, w_ref, b_ref, o_ref, proj_ref, *, cr_pad):
    j = pl.program_id(1)
    C, nt = o_ref.shape

    # ---- projection phase: run once per batch element (query tile j == 0) ----
    # One stacked matmul [w1; w2; w3] @ x on the MXU (bf16 operands, f32 acc),
    # bias + ReLU on the VPU, cached as bf16 in VMEM scratch for all j tiles.
    @pl.when(j == 0)
    def _():
        xb = x_ref[...].astype(jnp.bfloat16)                       # (C, N)
        p = jnp.dot(w_ref[...], xb,
                    preferred_element_type=jnp.float32)            # (P, N) f32
        p = jnp.maximum(p + b_ref[...], 0.0)                       # bias + ReLU
        proj_ref[...] = p.astype(jnp.bfloat16)

    col = pl.multiple_of(j * nt, 128)

    a_t = proj_ref[pl.ds(0, cr_pad), pl.ds(col, nt)]               # (Crp, Nt)
    bb = proj_ref[pl.ds(cr_pad, cr_pad), :]                        # (Crp, N)
    d = proj_ref[pl.ds(2 * cr_pad, C), :]                          # (C, N)
    # (zero-padded rows of a/bb contribute exactly 0 to the logits)

    # logits already transposed: L[i, q] = sum_k bb[k, i] * a_t[k, q]
    L = lax.dot_general(bb, a_t, (((0,), (0,)), ((), ())),
                        preferred_element_type=jnp.float32)        # (N, Nt)

    # Max-stabilized exponentials; the softmax normalization is deferred to the
    # (C, Nt) output so we never scale the (N, Nt) slab.
    m = jnp.max(L, axis=0, keepdims=True)                          # (1, Nt)
    e = jnp.exp(L - m)                                             # (N, Nt) f32
    inv = pl.reciprocal(jnp.sum(e, axis=0, keepdims=True),
                        approx=True)                               # (1, Nt) EUP

    # Plain (no-transpose) MXU contraction: out_raw = d @ e  -> (C, Nt)
    attn = jnp.dot(d, e.astype(jnp.bfloat16),
                   preferred_element_type=jnp.float32)
    x_t = x_ref[:, pl.ds(col, nt)]                                 # (C, Nt) f32
    o_ref[...] = (x_t + attn * inv).astype(o_ref.dtype)


def _fold_and_stack(params, C):
    """Fold BN scale into the 1x1-conv weights, zero-pad Cr up to a multiple of
    16 (bf16 sublane packing) and stack [w1; w2; w3] for a single matmul."""
    cr = params["w1"].shape[0]
    cr_pad = ((cr + 15) // 16) * 16

    def pad_rows(m, rows):
        return jnp.pad(m, ((0, rows - m.shape[0]), (0, 0)))

    w1 = params["w1"] * params["scale1"]
    w2 = params["w2"] * params["scale2"]
    w3 = params["w3"] * params["scale3"]
    w_all = jnp.concatenate(
        [pad_rows(w1, cr_pad), pad_rows(w2, cr_pad), w3], axis=0)
    b_all = jnp.concatenate(
        [pad_rows(params["bias1"], cr_pad),
         pad_rows(params["bias2"], cr_pad),
         params["bias3"]], axis=0)
    return w_all.astype(jnp.bfloat16), b_all.astype(jnp.float32), cr_pad


def point_attention_network(x, params, *, n_tile=None,
                            vmem_limit_bytes=48 * 1024 * 1024):
    """x: (B, C, N) float32.  params: dict of conv weights + BN scale/bias."""
    B, C, N = x.shape
    if n_tile is None:
        n_tile = 256 if (N % 256 == 0 and N > 256) else N
    assert N % n_tile == 0, (N, n_tile)
    assert n_tile % 128 == 0 or n_tile == N, (N, n_tile)
    nj = N // n_tile

    w_all, b_all, cr_pad = _fold_and_stack(params, C)
    P = w_all.shape[0]

    kernel = functools.partial(_point_attention_kernel, cr_pad=cr_pad)

    # NOTE: the weight/bias operands use a constant index_map, so the pipeline
    # never re-fetches them across grid steps; they are tiny (P x C bf16), so
    # default double-buffering is harmless here.
    return pl.pallas_call(
        kernel,
        out_shape=jax.ShapeDtypeStruct((B, C, N), x.dtype),
        grid_spec=pltpu.PrefetchScalarGridSpec(
            num_scalar_prefetch=0,
            grid=(B, nj),
            in_specs=[
                pl.BlockSpec((pl.Squeezed(), C, N), lambda b, j: (b, 0, 0)),  # x
                pl.BlockSpec((P, C), lambda b, j: (0, 0)),   # stacked weights
                pl.BlockSpec((P, 1), lambda b, j: (0, 0)),   # stacked biases
            ],
            out_specs=pl.BlockSpec((pl.Squeezed(), C, n_tile),
                                   lambda b, j: (b, 0, j)),
            scratch_shapes=[pltpu.VMEM((P, N), jnp.bfloat16)],  # cached projections
        ),
        compiler_params=pltpu.CompilerParams(
            dimension_semantics=("parallel", "arbitrary"),
            vmem_limit_bytes=vmem_limit_bytes),
    )(x, w_all, b_all)


def _make_params(key, C, ratio=8, eps=1e-5):
    Cr = C // ratio
    ks = jax.random.split(key, 12)

    def bn_fold(kg, kb, km, kv, ch):
        gamma = 1.0 + 0.1 * jax.random.normal(kg, (ch,), jnp.float32)
        beta = 0.1 * jax.random.normal(kb, (ch,), jnp.float32)
        mean = 0.1 * jax.random.normal(km, (ch,), jnp.float32)
        var = jnp.abs(jax.random.normal(kv, (ch,), jnp.float32)) + 0.5
        scale = gamma / jnp.sqrt(var + eps)
        bias = beta - mean * scale
        return scale.reshape(ch, 1), bias.reshape(ch, 1)

    w1 = 0.1 * jax.random.normal(ks[0], (Cr, C), jnp.float32)
    w2 = 0.1 * jax.random.normal(ks[1], (Cr, C), jnp.float32)
    w3 = 0.1 * jax.random.normal(ks[2], (C, C), jnp.float32)
    scale1, bias1 = bn_fold(ks[3], ks[4], ks[5], ks[6], Cr)
    scale2, bias2 = bn_fold(ks[7], ks[8], ks[9], ks[10], Cr)
    scale3, bias3 = bn_fold(ks[11], ks[4], ks[8], ks[2], C)
    return dict(w1=w1, scale1=scale1, bias1=bias1,
                w2=w2, scale2=scale2, bias2=bias2,
                w3=w3, scale3=scale3, bias3=bias3)


def _reference(x, p):
    # pure-JAX f32 reference of the same (inference-mode BN) forward pass
    def conv_bn_relu(x, w, s, b):
        y = jnp.einsum("oc,bcn->bon", w, x)
        return jnp.maximum(y * s[None] + b[None], 0.0)
    a = conv_bn_relu(x, p["w1"], p["scale1"], p["bias1"])          # (B,Cr,N)
    bb = conv_bn_relu(x, p["w2"], p["scale2"], p["bias2"])         # (B,Cr,N)
    logits = jnp.einsum("bki,bkj->bij", a, bb)                     # (B,N,N)
    s = jax.nn.softmax(logits, axis=-1)
    d = conv_bn_relu(x, p["w3"], p["scale3"], p["bias3"])          # (B,C,N)
    return x + jnp.einsum("bci,bji->bcj", d, s)


if __name__ == "__main__":
    B, C, N, ratio = 2, 32, 256, 8
    key = jax.random.PRNGKey(0)
    kx, kp = jax.random.split(key)
    x = jax.random.normal(kx, (B, C, N), jnp.float32)
    params = _make_params(kp, C, ratio)

    # n_tile=128 < N exercises the multi-tile (flash-style) path and the
    # cached-projection reuse across query tiles.
    out = point_attention_network(x, params, n_tile=128)
    out = jax.block_until_ready(out)

    ref = _reference(x, params)
    assert out.shape == (B, C, N)
    max_err = float(jnp.max(jnp.abs(out - ref)))
    # bf16 MXU operands + approx reciprocal -> loosened tolerance vs f32 ref
    assert jnp.allclose(out, ref, atol=2e-2, rtol=2e-2), f"max abs err {max_err}"
    print("KERNEL_OK")
</pallas_src>

<mosaic_0001>
module attributes {stable_mosaic.version = 11 : i64} {
  func.func @_point_attention_kernel(%arg0: i32, %arg1: i32, %arg2: memref<1x32x256xf32, #tpu.memory_space<vmem>>, %arg3: memref<64x32xbf16, #tpu.memory_space<vmem>>, %arg4: memref<64x1xf32, #tpu.memory_space<vmem>>, %arg5: memref<1x32x128xf32, #tpu.memory_space<vmem>>, %arg6: memref<64x256xbf16, #tpu.memory_space<vmem>>) attributes {dimension_semantics = [#tpu.dimension_semantics<parallel>, #tpu.dimension_semantics<arbitrary>], iteration_bounds = array<i64: 2, 2>, scalar_prefetch = 0 : i64, scratch_operands = 1 : i64, tpu.core_type = #tpu.core_type<tc>, window_params = [{transform_indices = @transform_0, window_bounds = array<i64: 1, 32, 256>}, {pipeline_mode = #tpu.pipeline_mode<synchronous>, transform_indices = @transform_1, window_bounds = array<i64: 64, 32>}, {pipeline_mode = #tpu.pipeline_mode<synchronous>, transform_indices = @transform_2, window_bounds = array<i64: 64, 1>}, {transform_indices = @transform_3, window_bounds = array<i64: 1, 32, 128>}]} {
    %c0_i32 = arith.constant 0 : i32
    %0 = arith.cmpi eq, %arg1, %c0_i32 : i32
    %1 = arith.extui %0 : i1 to i32
    %c0_i32_0 = arith.constant 0 : i32
    %2 = arith.cmpi ne, %1, %c0_i32_0 : i32
    scf.if %2 {
      %c0_11 = arith.constant 0 : index
      %c0_12 = arith.constant 0 : index
      %c0_13 = arith.constant 0 : index
      %29 = vector.load %arg2[%c0_11, %c0_12, %c0_13] : memref<1x32x256xf32, #tpu.memory_space<vmem>>, vector<1x32x256xf32>
      %30 = vector.shape_cast %29 : vector<1x32x256xf32> to vector<32x256xf32>
      %31 = arith.truncf %30 : vector<32x256xf32> to vector<32x256xbf16>
      %c0_14 = arith.constant 0 : index
      %c0_15 = arith.constant 0 : index
      %32 = vector.load %arg3[%c0_14, %c0_15] : memref<64x32xbf16, #tpu.memory_space<vmem>>, vector<64x32xbf16>
      %cst_16 = arith.constant dense<0.000000e+00> : vector<64x256xf32>
      %33 = tpu.matmul %32, %31, %cst_16 {dimension_numbers = #tpu.dot_dimension_numbers<[1], [0], [0], [1], [0, 0, 1, 1], [], []>} : vector<64x32xbf16>, vector<32x256xbf16>, vector<64x256xf32> -> vector<64x256xf32>
      %c0_17 = arith.constant 0 : index
      %c0_18 = arith.constant 0 : index
      %34 = vector.load %arg4[%c0_17, %c0_18] : memref<64x1xf32, #tpu.memory_space<vmem>>, vector<64x1xf32>
      %35 = vector.broadcast %34 : vector<64x1xf32> to vector<64x256xf32>
      %36 = arith.addf %33, %35 : vector<64x256xf32>
      %cst_19 = arith.constant 0.000000e+00 : f32
      %37 = vector.broadcast %cst_19 : f32 to vector<64x256xf32>
      %38 = arith.maximumf %36, %37 : vector<64x256xf32>
      %39 = arith.truncf %38 : vector<64x256xf32> to vector<64x256xbf16>
      %c0_20 = arith.constant 0 : index
      %c0_21 = arith.constant 0 : index
      %40 = vector.load %arg6[%c0_20, %c0_21] : memref<64x256xbf16, #tpu.memory_space<vmem>>, vector<64x256xbf16>
      tpu.vector_store %arg6[%c0_20, %c0_21], %39 {strides = array<i32>} : memref<64x256xbf16, #tpu.memory_space<vmem>>, vector<64x256xbf16>,
    } else {
    }
    %c128_i32 = arith.constant 128 : i32
    %3 = arith.muli %arg1, %c128_i32 : i32
    %4 = tpu.assume_multiple %3, 128 : i32
    %c0 = arith.constant 0 : index
    %5 = arith.index_cast %4 : i32 to index
    %6 = vector.load %arg6[%c0, %5] : memref<64x256xbf16, #tpu.memory_space<vmem>>, vector<16x128xbf16>
    %c16 = arith.constant 16 : index
    %c0_1 = arith.constant 0 : index
    %7 = vector.load %arg6[%c16, %c0_1] : memref<64x256xbf16, #tpu.memory_space<vmem>>, vector<16x256xbf16>
    %c32 = arith.constant 32 : index
    %c0_2 = arith.constant 0 : index
    %8 = vector.load %arg6[%c32, %c0_2] : memref<64x256xbf16, #tpu.memory_space<vmem>>, vector<32x256xbf16>
    %cst = arith.constant dense<0.000000e+00> : vector<256x128xf32>
    %9 = tpu.matmul %7, %6, %cst {dimension_numbers = #tpu.dot_dimension_numbers<[0], [0], [1], [1], [0, 1, 1, 1], [], []>} : vector<16x256xbf16>, vector<16x128xbf16>, vector<256x128xf32> -> vector<256x128xf32>
    %cst_3 = arith.constant dense<0xFF800000> : vector<128xf32>
    %10 = vector.multi_reduction <maximumf>, %9, %cst_3 [0] : vector<256x128xf32> to vector<128xf32>
    %11 = vector.shape_cast %10 : vector<128xf32> to vector<1x128xf32>
    %12 = vector.broadcast %11 : vector<1x128xf32> to vector<256x128xf32>
    %13 = arith.subf %9, %12 : vector<256x128xf32>
    %14 = math.exp %13 : vector<256x128xf32>
    %cst_4 = arith.constant dense<0.000000e+00> : vector<128xf32>
    %15 = vector.multi_reduction <add>, %14, %cst_4 [0] : vector<256x128xf32> to vector<128xf32>
    %16 = vector.shape_cast %15 : vector<128xf32> to vector<1x128xf32>
    %17 = tpu.reciprocal %16 {approx = true} : vector<1x128xf32> -> vector<1x128xf32>
    %18 = arith.truncf %14 : vector<256x128xf32> to vector<256x128xbf16>
    %cst_5 = arith.constant dense<0.000000e+00> : vector<32x128xf32>
    %19 = tpu.matmul %8, %18, %cst_5 {dimension_numbers = #tpu.dot_dimension_numbers<[1], [0], [0], [1], [0, 0, 1, 1], [], []>} : vector<32x256xbf16>, vector<256x128xbf16>, vector<32x128xf32> -> vector<32x128xf32>
    %c0_6 = arith.constant 0 : index
    %c0_7 = arith.constant 0 : index
    %20 = arith.index_cast %4 : i32 to index
    %21 = vector.load %arg2[%c0_6, %c0_7, %20] : memref<1x32x256xf32, #tpu.memory_space<vmem>>, vector<1x32x128xf32>
    %22 = vector.shape_cast %21 : vector<1x32x128xf32> to vector<32x128xf32>
    %23 = vector.broadcast %17 : vector<1x128xf32> to vector<32x128xf32>
    %24 = arith.mulf %19, %23 : vector<32x128xf32>
    %25 = arith.addf %22, %24 : vector<32x128xf32>
    %c0_8 = arith.constant 0 : index
    %c0_9 = arith.constant 0 : index
    %c0_10 = arith.constant 0 : index
    %26 = vector.load %arg5[%c0_8, %c0_9, %c0_10] : memref<1x32x128xf32, #tpu.memory_space<vmem>>, vector<1x32x128xf32>
    %27 = vector.shape_cast %26 : vector<1x32x128xf32> to vector<32x128xf32>
    %28 = vector.shape_cast %25 : vector<32x128xf32> to vector<1x32x128xf32>
    tpu.vector_store %arg5[%c0_8, %c0_9, %c0_10], %28 {strides = array<i32>} : memref<1x32x128xf32, #tpu.memory_space<vmem>>, vector<1x32x128xf32>,
    return
  }
  func.func @transform_0(%arg0: i32, %arg1: i32) -> (i32, i32, i32) {
    %c0_i32 = arith.constant 0 : i32
    %c0_i32_0 = arith.constant 0 : i32
    %c0_i32_1 = arith.constant 0 : i32
    return %arg0, %c0_i32, %c0_i32_0 : i32, i32, i32
  }
  func.func @transform_1(%arg0: i32, %arg1: i32) -> (i32, i32) {
    %c0_i32 = arith.constant 0 : i32
    %c0_i32_0 = arith.constant 0 : i32
    %c0_i32_1 = arith.constant 0 : i32
    return %c0_i32, %c0_i32_0 : i32, i32
  }
  func.func @transform_2(%arg0: i32, %arg1: i32) -> (i32, i32) {
    %c0_i32 = arith.constant 0 : i32
    %c0_i32_0 = arith.constant 0 : i32
    %c0_i32_1 = arith.constant 0 : i32
    return %c0_i32, %c0_i32_0 : i32, i32
  }
  func.func @transform_3(%arg0: i32, %arg1: i32) -> (i32, i32, i32) {
    %c0_i32 = arith.constant 0 : i32
    %c0_i32_0 = arith.constant 0 : i32
    return %arg0, %c0_i32, %arg1 : i32, i32, i32
  }
}

</mosaic_0001>

<llo_original>
// kernel: tpu_custom_call.1
$region0: #{tpu_custom_call.1}
  #allocation0 [shape = 'u32[]', space=smem, size = 0x4, offset = 0x4, fixed_abs, tag = 'smem constant byte address 0x4 - core index']
  #allocation1 [shape = 'u32[144,128]{1,0:T(1,128)}', space=vmem, size = 0x12000, scoped, tag = 'internal scratch']
  #allocation2 [shape = 'bf16[64,256]{1,0:T(8,128)(2,1)}', space=vmem, size = 0x8000, scoped, tag = 'scratch operand']
  %s0 = inlined_call_operand.hbm [shape: f32[2,32,256], index: 0, kind: input, shape index: {}]
  %s1 = inlined_call_operand.vmem [shape: bf16[64,32], index: 1, kind: input, shape index: {}]
  %s2 = inlined_call_operand.vmem [shape: f32[64,1], index: 2, kind: input, shape index: {}]
  %s3 = inlined_call_operand.hbm [shape: f32[2,32,256], index: 3, kind: output, shape index: {}]
  %s4 = sld [smem:[#allocation0]]
  $region53: #{tpu_custom_call.1} parent=0
    _
  %s6 = ssub.s32 1, %s4
  %s7 = scalar_select 0, %s6, %s4
  $region1: #{tpu_custom_call.1} parent=0
    #allocation3 [shape = 'u8[65536]{0}', space=vmem, size = 0x10000, scoped, tag = 'input window, operand 0']
    #allocation4 [shape = 's32[2]{0}', space=sflag, size = 0x8, scoped, tag = 'scoped memory for tpu_custom_call.1']
    #allocation5 [shape = 's32[2]{0}', space=sflag, size = 0x8, scoped, tag = 'scoped memory for tpu_custom_call.1']
    #allocation6 [shape = 'u8[32768]{0}', space=vmem, size = 0x8000, scoped, tag = 'output window, operand 0']
    %8 = vsyncpa [#allocation4], 0
    %s9 = scalar_lea.sflag [#allocation4], 1
    %10 = vsyncpa %s9, 0
    %11 = vsyncpa [#allocation5], 0
    %s12 = scalar_lea.sflag [#allocation5], 1
    %13 = vsyncpa %s12, 0
    loop: start=0, step=1, limit=6
    $region2: #{tpu_custom_call.1} parent=1 // loop_pre_header
      _
    $region3: #{tpu_custom_call.1} parent=1 // loop_header
      %s15 = sphi 0, %s19
      %p16 = scmp.ge.s32.totalorder %s15, 6
      %s22 = sphi 0, %s34
      %s23 = sphi 0, %s30
      %s24 = sphi 0, %s22
      %s25 = sphi 0, %s23
      %s26 = sphi 0, %s24
      %s27 = sphi 0, %s25
      %s37 = sphi 0, %s39
      %s40 = sphi 0, %s37
      %s41 = sphi 0, %s40
      %s57 = sphi 0, %s41
      %s61 = sphi 0, %s61
      %s63 = sphi 0, %s61
      %s64 = sphi 0, %s63
      %s78 = sphi 0, %s64
      %s82 = sphi 0, %s82
      %s84 = sphi 0, %s82
      %s85 = sphi 0, %s84
      %s99 = sphi 0, %s85
      %s107 = sphi 0, %s109
      %s110 = sphi 0, %s107
      %s111 = sphi 0, %s110
      %s127 = sphi 0, %s111
    $region4: #{tpu_custom_call.1} parent=1 // loop_header_branch
      %18 = sbr.rel (%p16) target = $region8
    $region5: #{tpu_custom_call.1} parent=1 // loop_body
      %s20 = ssub.s32 %s15, 1
      %s21 = ssub.s32 %s15, 2
      %s28 = sadd.s32 1, %s23
      %p29 = scmp.ge.s32.totalorder %s28, 2
      %s30 = scalar_select %p29, 0, %s28
      %s31 = sadd.s32 1, %s22
      %s32 = scalar_select %p29, %s31, %s22
      %p33 = scmp.ge.s32.totalorder %s32, 2
      %s34 = scalar_select %p33, 0, %s32
      %s35 = ssub.s32 %s22, %s34
      %p36 = scmp.eq.s32.totalorder %s35, 0
      %s38 = sadd.s32 %s37, 1
      %s39 = scalar_select %p36, %s37, %s38
      %p42 = pneg %p36
      %p43 = scmp.eq.s32.totalorder %s15, 3
      %p44 = por %p42, %p43
      %p45 = scmp.ne.s32.totalorder %s37, %s40
      %p46 = scmp.eq.s32.totalorder %s15, 0
      %p47 = por %p45, %p46
      %p48 = scmp.ne.s32.totalorder %s37, %s40
      %p49 = scmp.eq.s32.totalorder %s20, 3
      %p50 = por %p48, %p49
      %p51 = scmp.ne.s32.totalorder %s40, %s41
      %p52 = scmp.eq.s32.totalorder %s20, 0
      %p53 = por %p51, %p52
      %p54 = scmp.ne.s32.totalorder %s40, %s41
      %p55 = scmp.eq.s32.totalorder %s21, 3
      %p56 = por %p54, %p55
      %p58 = scmp.ne.s32.totalorder %s41, %s57
      %p59 = scmp.eq.s32.totalorder %s21, 0
      %p60 = por %p58, %p59
      %s62 = sadd.s32 %s61, 1
      %p65 = scmp.eq.s32.totalorder %s15, 3
      %p66 = scmp.ne.s32.totalorder %s61, %s63
      %p67 = scmp.eq.s32.totalorder %s15, 0
      %p68 = por %p66, %p67
      %p69 = scmp.ne.s32.totalorder %s61, %s63
      %p70 = scmp.eq.s32.totalorder %s20, 3
      %p71 = por %p69, %p70
      %p72 = scmp.ne.s32.totalorder %s63, %s64
      %p73 = scmp.eq.s32.totalorder %s20, 0
      %p74 = por %p72, %p73
      %p75 = scmp.ne.s32.totalorder %s63, %s64
      %p76 = scmp.eq.s32.totalorder %s21, 3
      %p77 = por %p75, %p76
      %p79 = scmp.ne.s32.totalorder %s64, %s78
      %p80 = scmp.eq.s32.totalorder %s21, 0
      %p81 = por %p79, %p80
      %s83 = sadd.s32 %s82, 1
      %p86 = scmp.eq.s32.totalorder %s15, 3
      %p87 = scmp.ne.s32.totalorder %s82, %s84
      %p88 = scmp.eq.s32.totalorder %s15, 0
      %p89 = por %p87, %p88
      %p90 = scmp.ne.s32.totalorder %s82, %s84
      %p91 = scmp.eq.s32.totalorder %s20, 3
      %p92 = por %p90, %p91
      %p93 = scmp.ne.s32.totalorder %s84, %s85
      %p94 = scmp.eq.s32.totalorder %s20, 0
      %p95 = por %p93, %p94
      %p96 = scmp.ne.s32.totalorder %s84, %s85
      %p97 = scmp.eq.s32.totalorder %s21, 3
      %p98 = por %p96, %p97
      %p100 = scmp.ne.s32.totalorder %s85, %s99
      %p101 = scmp.eq.s32.totalorder %s21, 0
      %p102 = por %p100, %p101
      %s103 = ssub.s32 %s22, %s34
      %s104 = ssub.s32 %s23, %s30
      %s105 = sor.u32 %s103, %s104
      %p106 = scmp.eq.s32.totalorder %s105, 0
      %s108 = sadd.s32 %s107, 1
      %s109 = scalar_select %p106, %s107, %s108
      %p112 = pneg %p106
      %p113 = scmp.eq.s32.totalorder %s15, 3
      %p114 = por %p112, %p113
      %p115 = scmp.ne.s32.totalorder %s107, %s110
      %p116 = scmp.eq.s32.totalorder %s15, 0
      %p117 = por %p115, %p116
      %p118 = scmp.ne.s32.totalorder %s107, %s110
      %p119 = scmp.eq.s32.totalorder %s20, 3
      %p120 = por %p118, %p119
      %p121 = scmp.ne.s32.totalorder %s110, %s111
      %p122 = scmp.eq.s32.totalorder %s20, 0
      %p123 = por %p121, %p122
      %p124 = scmp.ne.s32.totalorder %s110, %s111
      %p125 = scmp.eq.s32.totalorder %s21, 3
      %p126 = por %p124, %p125
      %p128 = scmp.ne.s32.totalorder %s111, %s127
      %p129 = scmp.eq.s32.totalorder %s21, 0
      %p130 = por %p128, %p129
      %p131 = scmp.le.s32.totalorder 1, %s15
      %p132 = scmp.lt.s32.totalorder %s15, 5
      %p133 = pnand %p131, %p132
      %p134 = pneg %p133
      // Predicated region
      $region9: #{tpu_custom_call.1} parent=5 // pred_check
        _
      $region10: #{tpu_custom_call.1} parent=5 // pred_check_branch
        %136 = sbr.rel (%p133) target = $region12
      $region11: #{tpu_custom_call.1} parent=5 // pred_region
        %s137 = ssub.s32 %s15, 1
        // Predicated region
        $region13: #{tpu_custom_call.1} parent=11 // pred_check
          %p138 = pneg %p74
        $region14: #{tpu_custom_call.1} parent=11 // pred_check_branch
          %140 = sbr.rel (%p138) target = $region16
        $region15: #{tpu_custom_call.1} parent=11 // pred_region
          _
        $region16: #{tpu_custom_call.1} parent=11 // pred_fallthru
          _
        // Predicated region
        $region17: #{tpu_custom_call.1} parent=11 // pred_check
          %p141 = pneg %p95
        $region18: #{tpu_custom_call.1} parent=11 // pred_check_branch
          %143 = sbr.rel (%p141) target = $region20
        $region19: #{tpu_custom_call.1} parent=11 // pred_region
          _
        $region20: #{tpu_custom_call.1} parent=11 // pred_fallthru
          _
      $region12: #{tpu_custom_call.1} parent=5 // pred_fallthru
        _
      %p144 = scmp.lt.s32.totalorder %s15, 4
      // Predicated region
      $region21: #{tpu_custom_call.1} parent=5 // pred_check
        %p145 = pneg %p144
      $region22: #{tpu_custom_call.1} parent=5 // pred_check_branch
        %147 = sbr.rel (%p145) target = $region24
      $region23: #{tpu_custom_call.1} parent=5 // pred_region
        // Predicated region
        $region25: #{tpu_custom_call.1} parent=23 // pred_check
          %p148 = pneg %p47
        $region26: #{tpu_custom_call.1} parent=23 // pred_check_branch
          %150 = sbr.rel (%p148) target = $region28
        $region27: #{tpu_custom_call.1} parent=23 // pred_region
          %s151 = sand.u32 %s37, 1
          %s152 = scalar_lea.sflag [#allocation4], %s151
          %s153 = sand.u32 %s37, 1
          %s154 = smul.addr %s153, 64
          %s155 = scalar_lea.vmem [#allocation3], %s154
          %s157 = ssub.s32 1024, 1024
          %158 = vsyncadd %s152, %s157
          %s159 = smul.addr %s22, 8
          %s160 = smul.addr %s159, 128
          %s161 = scalar_lea.hbm %s0, %s160
          %s162 = sshll.u32 %s155, 4
          %s163 = int_to_ptr.vmem [resolvable:$true] %s162
          %168 = dma.hbm_to_vmem [thread:$0]  %s161, 1024, %s163, %s152, 256, 256, 16
        $region28: #{tpu_custom_call.1} parent=23 // pred_fallthru
          _
      $region24: #{tpu_custom_call.1} parent=5 // pred_fallthru
        _
      %p169 = scmp.le.s32.totalorder 1, %s15
      %p170 = scmp.lt.s32.totalorder %s15, 5
      %p171 = pnand %p169, %p170
      %p172 = pneg %p171
      // Predicated region
      $region29: #{tpu_custom_call.1} parent=5 // pred_check
        _
      $region30: #{tpu_custom_call.1} parent=5 // pred_check_branch
        %174 = sbr.rel (%p171) target = $region32
      $region31: #{tpu_custom_call.1} parent=5 // pred_region
        %s175 = ssub.s32 %s15, 1
        %s176 = sand.u32 %s40, 1
        %s177 = scalar_lea.sflag [#allocation4], %s176
        %s178 = sand.u32 %s40, 1
        %s179 = smul.addr %s178, 64
        %s180 = scalar_lea.vmem [#allocation3], %s179
        // Predicated region
        $region33: #{tpu_custom_call.1} parent=31 // pred_check
          %p181 = pneg %p53
        $region34: #{tpu_custom_call.1} parent=31 // pred_check_branch
          %183 = sbr.rel (%p181) target = $region36
        $region35: #{tpu_custom_call.1} parent=31 // pred_region
          %184 = dma.done %s177, 1024
        $region36: #{tpu_custom_call.1} parent=31 // pred_fallthru
          _
        %s185 = sand.u32 %s40, 1
        %s186 = scalar_lea.sflag [#allocation4], %s185
        %s187 = sand.u32 %s40, 1
        %s188 = smul.addr %s187, 64
        %s189 = scalar_lea.vmem [#allocation3], %s188
        %p190 = pneg %p53
        %p191 = pneg %p50
        %p192 = pneg %p74
        %p193 = pneg %p71
        %p194 = pneg %p95
        %p195 = pneg %p92
        %p196 = pneg %p123
        %p197 = pneg %p120
        %s198 = sand.u32 %s110, 1
        %s199 = scalar_lea.sflag [#allocation5], %s198
        %s200 = sand.u32 %s110, 1
        %s201 = smul.addr %s200, 32
        %s202 = scalar_lea.vmem [#allocation6], %s201
        %p204 = scmp.eq.s32.totalorder %s25, 0
        // Predicated region
        $region37: #{tpu_custom_call.1} parent=31 // pred_check
          %p205 = pneg %p204
        $region38: #{tpu_custom_call.1} parent=31 // pred_check_branch
          %207 = sbr.rel (%p205) target = $region40
        $region39: #{tpu_custom_call.1} parent=31 // pred_region
          %v208 = vld [vmem:[%s180] sm:$0xff]
          %v209 = vld [vmem:[%s180 + $0x8] sm:$0xff]
          %v210 = vld [vmem:[%s180 + $0x10] sm:$0xff]
          %v211 = vld [vmem:[%s180 + $0x18] sm:$0xff]
          %v212 = vld [vmem:[%s180 + $0x20] sm:$0xff]
          %v213 = vld [vmem:[%s180 + $0x28] sm:$0xff]
          %v214 = vld [vmem:[%s180 + $0x30] sm:$0xff]
          %v215 = vld [vmem:[%s180 + $0x38] sm:$0xff]
          %v216 = vpack.c.bf16 %v210, %v208
          %v217 = vpack.c.bf16 %v211, %v209
          %v218 = vpack.c.bf16 %v214, %v212
          %v219 = vpack.c.bf16 %v215, %v213
          %v220 = vld [vmem:[%s1] sm:$0xf]
          %v221 = vld [vmem:[%s1 + $0x4] sm:$0xf]
          %v222 = vld [vmem:[%s1 + $0x8] sm:$0xf]
          %v223 = vld [vmem:[%s1 + $0xc] sm:$0xf]
          %v224 = vld [vmem:[%s1 + $0x10] sm:$0xf]
          %v225 = vld [vmem:[%s1 + $0x14] sm:$0xf]
          %v226 = vld [vmem:[%s1 + $0x18] sm:$0xf]
          %v227 = vld [vmem:[%s1 + $0x1c] sm:$0xf]
          %v228 = vld [vmem:[%s2] sm:$0xff]
          %v229 = vld [vmem:[%s2 + $0x8] sm:$0xff]
          %v230 = vld [vmem:[%s2 + $0x10] sm:$0xff]
          %v231 = vld [vmem:[%s2 + $0x18] sm:$0xff]
          %v232 = vld [vmem:[%s2 + $0x20] sm:$0xff]
          %v233 = vld [vmem:[%s2 + $0x28] sm:$0xff]
          %v234 = vld [vmem:[%s2 + $0x30] sm:$0xff]
          %v235 = vld [vmem:[%s2 + $0x38] sm:$0xff]
          %237 = vset.pattern.permute.xlu0 0
          %238 = vperm.xlu0 %237, %v228
          %v239 = vpop.permute.xlu0 %238
          %242 = vset.pattern.permute.xlu0 0
          %243 = vperm.xlu0 %242, %v229
          %v244 = vpop.permute.xlu0 %243
          %247 = vset.pattern.permute.xlu0 0
          %248 = vperm.xlu0 %247, %v230
          %v249 = vpop.permute.xlu0 %248
          %252 = vset.pattern.permute.xlu0 0
          %253 = vperm.xlu0 %252, %v231
          %v254 = vpop.permute.xlu0 %253
          %257 = vset.pattern.permute.xlu0 0
          %258 = vperm.xlu0 %257, %v232
          %v259 = vpop.permute.xlu0 %258
          %262 = vset.pattern.permute.xlu0 0
          %263 = vperm.xlu0 %262, %v233
          %v264 = vpop.permute.xlu0 %263
          %267 = vset.pattern.permute.xlu0 0
          %268 = vperm.xlu0 %267, %v234
          %v269 = vpop.permute.xlu0 %268
          %272 = vset.pattern.permute.xlu0 0
          %273 = vperm.xlu0 %272, %v235
          %v274 = vpop.permute.xlu0 %273
          %v284 = vunpack.c.l.b16 %v220
          %v285 = vunpack.c.l.b16 %v221
          %v286 = vunpack.c.l.b16 %v222
          %v287 = vunpack.c.l.b16 %v223
          %v288 = vunpack.c.l.b16 %v224
          %v289 = vunpack.c.l.b16 %v225
          %v290 = vunpack.c.l.b16 %v226
          %v291 = vunpack.c.l.b16 %v227
          %v292 = vpack.c.b16 %v285, %v284
          %v293 = vpack.c.b16 %v287, %v286
          %v294 = vpack.c.b16 %v289, %v288
          %v295 = vpack.c.b16 %v291, %v290
          %vm296 = vcmask 261120
          %v298 = vsel %vm296, %v292, 0
          %v301 = vsel %vm296, %v293, 0
          %v304 = vsel %vm296, %v294, 0
          %v307 = vsel %vm296, %v295, 0
          %309 = vmatprep.subr.bf16.mxu0 0
          %310 = vmatpush1.bf16.msra.mxu0 0
          %311 = vmatprep.subr.bf16.mxu0 0
          %312 = vmatpush1.bf16.msra.mxu0 0
          %313 = vmatprep.subr.bf16.mxu0 0
          %314 = vmatpush1.bf16.msra.mxu0 0
          %315 = vmatprep.subr.bf16.mxu0 0
          %316 = vmatpush1.bf16.msra.mxu0 0
          %317 = vmatprep.subr.bf16.mxu0 0
          %318 = vmatpush1.bf16.msra.mxu0 0
          %319 = vmatprep.subr.bf16.mxu0 0
          %320 = vmatpush1.bf16.msra.mxu0 0
          %321 = vmatprep.subr.bf16.mxu0 %v219
          %322 = vmatpush1.bf16.msra.mxu0 %v218
          %323 = vmatprep.subr.bf16.mxu0 %v217
          %324 = vmatpush1.bf16.msra.mxu0 %v216
          %325 = vmatprep.subr.bf16.mxu0 0
          %326 = vmatpush2.bf16.msra.mxu0 0
          %327 = vmatprep.subr.bf16.mxu0 0
          %328 = vmatpush2.bf16.msra.mxu0 0
          %329 = vmatprep.subr.bf16.mxu0 0
          %330 = vmatpush2.bf16.msra.mxu0 0
          %331 = vmatprep.subr.bf16.mxu0 0
          %332 = vmatpush2.bf16.msra.mxu0 0
          %333 = vmatprep.subr.bf16.mxu0 0
          %334 = vmatpush2.bf16.msra.mxu0 0
          %335 = vmatprep.subr.bf16.mxu0 0
          %336 = vmatpush2.bf16.msra.mxu0 0
          %337 = vmatprep.subr.bf16.mxu0 0
          %338 = vmatpush2.bf16.msra.mxu0 0
          %339 = vmatprep.subr.bf16.mxu0 0
          %340 = vmatpush2.bf16.msra.mxu0 0
          %341 = vmatprep.mubr.bf16.mxu0 0
          %342 = vmatmul.mubr.bf16.gmra.mxu0 %v298
          %v343 = vpop.f32.mrf.mxu0
          %v344 = vadd.f32 %v239, %v343
          %v345 = vpop.f32.mrf.mxu0
          %v346 = vadd.f32 %v239, %v345
          %v347 = vpop.f32.mrf.mxu0
          %v348 = vadd.f32 %v244, %v347
          %v349 = vpop.f32.mrf.mxu0
          %v350 = vadd.f32 %v244, %v349
          %351 = vmatprep.mubr.bf16.mxu0 0
          %352 = vmatmul.mubr.bf16.gmra.mxu0 %v301
          %v353 = vpop.f32.mrf.mxu0
          %v354 = vadd.f32 %v249, %v353
          %v355 = vpop.f32.mrf.mxu0
          %v356 = vadd.f32 %v249, %v355
          %v357 = vpop.f32.mrf.mxu0
          %v358 = vadd.f32 %v254, %v357
          %v359 = vpop.f32.mrf.mxu0
          %v360 = vadd.f32 %v254, %v359
          %361 = vmatprep.mubr.bf16.mxu0 0
          %362 = vmatmul.mubr.bf16.gmra.mxu0 %v304
          %v363 = vpop.f32.mrf.mxu0
          %v364 = vadd.f32 %v259, %v363
          %v365 = vpop.f32.mrf.mxu0
          %v366 = vadd.f32 %v259, %v365
          %v367 = vpop.f32.mrf.mxu0
          %v368 = vadd.f32 %v264, %v367
          %v369 = vpop.f32.mrf.mxu0
          %v370 = vadd.f32 %v264, %v369
          %371 = vmatprep.mubr.bf16.mxu0 0
          %372 = vmatmul.mubr.bf16.gmra.mxu0 %v307
          %v373 = vpop.f32.mrf.mxu0
          %v374 = vadd.f32 %v269, %v373
          %v375 = vpop.f32.mrf.mxu0
          %v376 = vadd.f32 %v269, %v375
          %v377 = vpop.f32.mrf.mxu0
          %v378 = vadd.f32 %v274, %v377
          %v379 = vpop.f32.mrf.mxu0
          %v380 = vadd.f32 %v274, %v379
          %381 = vdwg.mxu0
          %v382 = vmax.f32 %v344, 0.0
          %v383 = vmax.f32 %v346, 0.0
          %v384 = vmax.f32 %v348, 0.0
          %v385 = vmax.f32 %v350, 0.0
          %v386 = vmax.f32 %v354, 0.0
          %v387 = vmax.f32 %v356, 0.0
          %v388 = vmax.f32 %v358, 0.0
          %v389 = vmax.f32 %v360, 0.0
          %v390 = vmax.f32 %v364, 0.0
          %v391 = vmax.f32 %v366, 0.0
          %v392 = vmax.f32 %v368, 0.0
          %v393 = vmax.f32 %v370, 0.0
          %v394 = vmax.f32 %v374, 0.0
          %v395 = vmax.f32 %v376, 0.0
          %v396 = vmax.f32 %v378, 0.0
          %v397 = vmax.f32 %v380, 0.0
          %v398 = vpack.c.bf16 %v384, %v382
          %v399 = vpack.c.bf16 %v385, %v383
          %v400 = vpack.c.bf16 %v388, %v386
          %v401 = vpack.c.bf16 %v389, %v387
          %v402 = vpack.c.bf16 %v392, %v390
          %v403 = vpack.c.bf16 %v393, %v391
          %v404 = vpack.c.bf16 %v396, %v394
          %v405 = vpack.c.bf16 %v397, %v395
          %v414 = vunpack.c.l.b16 %v398
          %v415 = vunpack.c.l.b16 %v399
          %v416 = vunpack.c.h.b16 %v398
          %v417 = vunpack.c.h.b16 %v399
          %v418 = vunpack.c.l.b16 %v400
          %v419 = vunpack.c.l.b16 %v401
          %v420 = vunpack.c.h.b16 %v400
          %v421 = vunpack.c.h.b16 %v401
          %v422 = vunpack.c.l.b16 %v402
          %v423 = vunpack.c.l.b16 %v403
          %v424 = vunpack.c.h.b16 %v402
          %v425 = vunpack.c.h.b16 %v403
          %v426 = vunpack.c.l.b16 %v404
          %v427 = vunpack.c.l.b16 %v405
          %v428 = vunpack.c.h.b16 %v404
          %v429 = vunpack.c.h.b16 %v405
          %v430 = vpack.c.b16 %v415, %v414
          %v431 = vpack.c.b16 %v417, %v416
          %v432 = vpack.c.b16 %v419, %v418
          %v433 = vpack.c.b16 %v421, %v420
          %v434 = vpack.c.b16 %v423, %v422
          %v435 = vpack.c.b16 %v425, %v424
          %v436 = vpack.c.b16 %v427, %v426
          %v437 = vpack.c.b16 %v429, %v428
          %446 = vst [vmem:[#allocation2] sm:$0xff] %v430
          %447 = vst [vmem:[#allocation2 + $0x8] sm:$0xff] %v431
          %448 = vst [vmem:[#allocation2 + $0x10] sm:$0xff] %v432
          %449 = vst [vmem:[#allocation2 + $0x18] sm:$0xff] %v433
          %450 = vst [vmem:[#allocation2 + $0x20] sm:$0xff] %v434
          %451 = vst [vmem:[#allocation2 + $0x28] sm:$0xff] %v435
          %452 = vst [vmem:[#allocation2 + $0x30] sm:$0xff] %v436
          %453 = vst [vmem:[#allocation2 + $0x38] sm:$0xff] %v437
        $region40: #{tpu_custom_call.1} parent=31 // pred_fallthru
          _
        %s454 = smul.u32 %s25, 128
        %s455 = sshra.s32 %s454, 7
        %s456 = sand.u32 %s454, 127
        %s457 = smul.addr %s455, 4
        %s458 = scalar_lea.vmem [#allocation2], %s457
        %v459 = vld [vmem:[%s458] sm:$0xf]
        %v460 = vld [vmem:[%s458 + $0x8] sm:$0xf]
        %v461 = vld [vmem:[#allocation2 + $0x10] sm:$0xff]
        %v462 = vld [vmem:[#allocation2 + $0x18] sm:$0xff]
        %v463 = vld [vmem:[#allocation2 + $0x20] sm:$0xff]
        %v464 = vld [vmem:[#allocation2 + $0x28] sm:$0xff]
        %v465 = vld [vmem:[#allocation2 + $0x30] sm:$0xff]
        %v466 = vld [vmem:[#allocation2 + $0x38] sm:$0xff]
        %v469 = vunpack.c.l.b16 %v461
        %v470 = vunpack.c.h.b16 %v461
        %v471 = vunpack.c.l.b16 %v462
        %v472 = vunpack.c.h.b16 %v462
        %v473 = vpack.c.b16 %v471, %v469
        %v474 = vpack.c.b16 %v472, %v470
        %477 = vxpose.xlu0.c.b16.start [1/8] %v473, 128
        %478 = vxpose.xlu0.c.b16.cont [2/8] 0, 128
        %479 = vxpose.xlu0.c.b16.cont [3/8] 0, 128
        %480 = vxpose.xlu0.c.b16.cont [4/8] 0, 128
        %481 = vxpose.xlu0.c.b16.cont [5/8] 0, 128
        %482 = vxpose.xlu0.c.b16.cont [6/8] 0, 128
        %483 = vxpose.xlu0.c.b16.cont [7/8] 0, 128
        %484 = vxpose.xlu0.c.b16.end [8/8] 0, 128
        %v485 = vpop.trf.xlu0
        %v486 = vpop.trf.xlu0
        %v487 = vpop.trf.xlu0
        %v488 = vpop.trf.xlu0
        %v489 = vpop.trf.xlu0
        %v490 = vpop.trf.xlu0
        %v491 = vpop.trf.xlu0
        %v492 = vpop.trf.xlu0
        %493 = vxpose.xlu0.c.b16.start [1/8] %v474, 128
        %494 = vxpose.xlu0.c.b16.cont [2/8] 0, 128
        %495 = vxpose.xlu0.c.b16.cont [3/8] 0, 128
        %496 = vxpose.xlu0.c.b16.cont [4/8] 0, 128
        %497 = vxpose.xlu0.c.b16.cont [5/8] 0, 128
        %498 = vxpose.xlu0.c.b16.cont [6/8] 0, 128
        %499 = vxpose.xlu0.c.b16.cont [7/8] 0, 128
        %500 = vxpose.xlu0.c.b16.end [8/8] 0, 128
        %v501 = vpop.trf.xlu0
        %v502 = vpop.trf.xlu0
        %v503 = vpop.trf.xlu0
        %v504 = vpop.trf.xlu0
        %v505 = vpop.trf.xlu0
        %v506 = vpop.trf.xlu0
        %v507 = vpop.trf.xlu0
        %v508 = vpop.trf.xlu0
        %v511 = vunpack.c.l.b16 %v459
        %v512 = vunpack.c.l.b16 %v460
        %v513 = vpack.c.b16 %v512, %v511
        %vm515 = vcmask 130048
        %v517 = vsel %vm515, %v485, 0
        %v520 = vsel %vm515, %v486, 0
        %v523 = vsel %vm515, %v487, 0
        %v526 = vsel %vm515, %v488, 0
        %v529 = vsel %vm515, %v489, 0
        %v532 = vsel %vm515, %v490, 0
        %v535 = vsel %vm515, %v491, 0
        %v538 = vsel %vm515, %v492, 0
        %v541 = vsel %vm515, %v501, 0
        %v544 = vsel %vm515, %v502, 0
        %v547 = vsel %vm515, %v503, 0
        %v550 = vsel %vm515, %v504, 0
        %v553 = vsel %vm515, %v505, 0
        %v556 = vsel %vm515, %v506, 0
        %v559 = vsel %vm515, %v507, 0
        %v562 = vsel %vm515, %v508, 0
        %564 = vmatprep.subr.bf16.mxu0 0
        %565 = vmatpush1.bf16.msra.mxu0 0
        %566 = vmatprep.subr.bf16.mxu0 0
        %567 = vmatpush1.bf16.msra.mxu0 0
        %568 = vmatprep.subr.bf16.mxu0 0
        %569 = vmatpush1.bf16.msra.mxu0 0
        %570 = vmatprep.subr.bf16.mxu0 0
        %571 = vmatpush1.bf16.msra.mxu0 0
        %572 = vmatprep.subr.bf16.mxu0 0
        %573 = vmatpush1.bf16.msra.mxu0 0
        %574 = vmatprep.subr.bf16.mxu0 0
        %575 = vmatpush1.bf16.msra.mxu0 0
        %576 = vmatprep.subr.bf16.mxu0 0
        %577 = vmatpush1.bf16.msra.mxu0 0
        %578 = vmatprep.subr.bf16.mxu0 0
        %579 = vmatpush1.bf16.msra.mxu0 %v513
        %580 = vmatprep.subr.bf16.mxu0 0
        %581 = vmatpush2.bf16.msra.mxu0 0
        %582 = vmatprep.subr.bf16.mxu0 0
        %583 = vmatpush2.bf16.msra.mxu0 0
        %584 = vmatprep.subr.bf16.mxu0 0
        %585 = vmatpush2.bf16.msra.mxu0 0
        %586 = vmatprep.subr.bf16.mxu0 0
        %587 = vmatpush2.bf16.msra.mxu0 0
        %588 = vmatprep.subr.bf16.mxu0 0
        %589 = vmatpush2.bf16.msra.mxu0 0
        %590 = vmatprep.subr.bf16.mxu0 0
        %591 = vmatpush2.bf16.msra.mxu0 0
        %592 = vmatprep.subr.bf16.mxu0 0
        %593 = vmatpush2.bf16.msra.mxu0 0
        %594 = vmatprep.subr.bf16.mxu0 0
        %595 = vmatpush2.bf16.msra.mxu0 0
        %596 = vmatprep.mubr.bf16.mxu0 0
        %597 = vmatmul.mubr.bf16.gmra.mxu0 %v517
        %v598 = vpop.f32.mrf.mxu0
        %v599 = vadd.f32 0.0, %v598
        %v600 = vpop.f32.mrf.mxu0
        %v601 = vpop.f32.mrf.mxu0
        %v602 = vadd.f32 0.0, %v601
        %v603 = vpop.f32.mrf.mxu0
        %604 = vmatprep.mubr.bf16.mxu0 0
        %605 = vmatmul.mubr.bf16.gmra.mxu0 %v520
        %v606 = vpop.f32.mrf.mxu0
        %v607 = vadd.f32 0.0, %v606
        %v608 = vpop.f32.mrf.mxu0
        %v609 = vpop.f32.mrf.mxu0
        %v610 = vadd.f32 0.0, %v609
        %v611 = vpop.f32.mrf.mxu0
        %612 = vmatprep.mubr.bf16.mxu0 0
        %613 = vmatmul.mubr.bf16.gmra.mxu0 %v523
        %v614 = vpop.f32.mrf.mxu0
        %v615 = vadd.f32 0.0, %v614
        %v616 = vpop.f32.mrf.mxu0
        %v617 = vpop.f32.mrf.mxu0
        %v618 = vadd.f32 0.0, %v617
        %v619 = vpop.f32.mrf.mxu0
        %620 = vmatprep.mubr.bf16.mxu0 0
        %621 = vmatmul.mubr.bf16.gmra.mxu0 %v526
        %v622 = vpop.f32.mrf.mxu0
        %v623 = vadd.f32 0.0, %v622
        %v624 = vpop.f32.mrf.mxu0
        %v625 = vpop.f32.mrf.mxu0
        %v626 = vadd.f32 0.0, %v625
        %v627 = vpop.f32.mrf.mxu0
        %628 = vmatprep.mubr.bf16.mxu0 0
        %629 = vmatmul.mubr.bf16.gmra.mxu0 %v529
        %v630 = vpop.f32.mrf.mxu0
        %v631 = vadd.f32 0.0, %v630
        %v632 = vpop.f32.mrf.mxu0
        %v633 = vpop.f32.mrf.mxu0
        %v634 = vadd.f32 0.0, %v633
        %v635 = vpop.f32.mrf.mxu0
        %636 = vmatprep.mubr.bf16.mxu0 0
        %637 = vmatmul.mubr.bf16.gmra.mxu0 %v532
        %v638 = vpop.f32.mrf.mxu0
        %v639 = vadd.f32 0.0, %v638
        %v640 = vpop.f32.mrf.mxu0
        %v641 = vpop.f32.mrf.mxu0
        %v642 = vadd.f32 0.0, %v641
        %v643 = vpop.f32.mrf.mxu0
        %644 = vmatprep.mubr.bf16.mxu0 0
        %645 = vmatmul.mubr.bf16.gmra.mxu0 %v535
        %v646 = vpop.f32.mrf.mxu0
        %v647 = vadd.f32 0.0, %v646
        %v648 = vpop.f32.mrf.mxu0
        %v649 = vpop.f32.mrf.mxu0
        %v650 = vadd.f32 0.0, %v649
        %v651 = vpop.f32.mrf.mxu0
        %652 = vmatprep.mubr.bf16.mxu0 0
        %653 = vmatmul.mubr.bf16.gmra.mxu0 %v538
        %v654 = vpop.f32.mrf.mxu0
        %v655 = vadd.f32 0.0, %v654
        %v656 = vpop.f32.mrf.mxu0
        %v657 = vpop.f32.mrf.mxu0
        %v658 = vadd.f32 0.0, %v657
        %v659 = vpop.f32.mrf.mxu0
        %660 = vmatprep.mubr.bf16.mxu0 0
        %661 = vmatmul.mubr.bf16.gmra.mxu0 %v541
        %v662 = vpop.f32.mrf.mxu0
        %v663 = vadd.f32 0.0, %v662
        %v664 = vpop.f32.mrf.mxu0
        %v665 = vpop.f32.mrf.mxu0
        %v666 = vadd.f32 0.0, %v665
        %v667 = vpop.f32.mrf.mxu0
        %668 = vmatprep.mubr.bf16.mxu0 0
        %669 = vmatmul.mubr.bf16.gmra.mxu0 %v544
        %v670 = vpop.f32.mrf.mxu0
        %v671 = vadd.f32 0.0, %v670
        %v672 = vpop.f32.mrf.mxu0
        %v673 = vpop.f32.mrf.mxu0
        %v674 = vadd.f32 0.0, %v673
        %v675 = vpop.f32.mrf.mxu0
        %676 = vmatprep.mubr.bf16.mxu0 0
        %677 = vmatmul.mubr.bf16.gmra.mxu0 %v547
        %v678 = vpop.f32.mrf.mxu0
        %v679 = vadd.f32 0.0, %v678
        %v680 = vpop.f32.mrf.mxu0
        %v681 = vpop.f32.mrf.mxu0
        %v682 = vadd.f32 0.0, %v681
        %v683 = vpop.f32.mrf.mxu0
        %684 = vmatprep.mubr.bf16.mxu0 0
        %685 = vmatmul.mubr.bf16.gmra.mxu0 %v550
        %v686 = vpop.f32.mrf.mxu0
        %v687 = vadd.f32 0.0, %v686
        %v688 = vpop.f32.mrf.mxu0
        %v689 = vpop.f32.mrf.mxu0
        %v690 = vadd.f32 0.0, %v689
        %v691 = vpop.f32.mrf.mxu0
        %692 = vmatprep.mubr.bf16.mxu0 0
        %693 = vmatmul.mubr.bf16.gmra.mxu0 %v553
        %v694 = vpop.f32.mrf.mxu0
        %v695 = vadd.f32 0.0, %v694
        %v696 = vpop.f32.mrf.mxu0
        %v697 = vpop.f32.mrf.mxu0
        %v698 = vadd.f32 0.0, %v697
        %v699 = vpop.f32.mrf.mxu0
        %700 = vmatprep.mubr.bf16.mxu0 0
        %701 = vmatmul.mubr.bf16.gmra.mxu0 %v556
        %v702 = vpop.f32.mrf.mxu0
        %v703 = vadd.f32 0.0, %v702
        %v704 = vpop.f32.mrf.mxu0
        %v705 = vpop.f32.mrf.mxu0
        %v706 = vadd.f32 0.0, %v705
        %v707 = vpop.f32.mrf.mxu0
        %708 = vmatprep.mubr.bf16.mxu0 0
        %709 = vmatmul.mubr.bf16.gmra.mxu0 %v559
        %v710 = vpop.f32.mrf.mxu0
        %v711 = vadd.f32 0.0, %v710
        %v712 = vpop.f32.mrf.mxu0
        %v713 = vpop.f32.mrf.mxu0
        %v714 = vadd.f32 0.0, %v713
        %v715 = vpop.f32.mrf.mxu0
        %716 = vmatprep.mubr.bf16.mxu0 0
        %717 = vmatmul.mubr.bf16.gmra.mxu0 %v562
        %v718 = vpop.f32.mrf.mxu0
        %v719 = vadd.f32 0.0, %v718
        %v720 = vpop.f32.mrf.mxu0
        %v721 = vpop.f32.mrf.mxu0
        %v722 = vadd.f32 0.0, %v721
        %v723 = vpop.f32.mrf.mxu0
        %724 = vdwg.mxu0
        %v725 = vmax.f32 %v599, %v615
        %v726 = vmax.f32 %v602, %v618
        %v727 = vmax.f32 %v607, %v623
        %v728 = vmax.f32 %v610, %v626
        %v729 = vmax.f32 %v725, %v631
        %v730 = vmax.f32 %v726, %v634
        %v731 = vmax.f32 %v727, %v639
        %v732 = vmax.f32 %v728, %v642
        %v733 = vmax.f32 %v729, %v647
        %v734 = vmax.f32 %v730, %v650
        %v735 = vmax.f32 %v731, %v655
        %v736 = vmax.f32 %v732, %v658
        %v737 = vmax.f32 %v733, %v663
        %v738 = vmax.f32 %v734, %v666
        %v739 = vmax.f32 %v735, %v671
        %v740 = vmax.f32 %v736, %v674
        %v741 = vmax.f32 %v737, %v679
        %v742 = vmax.f32 %v738, %v682
        %v743 = vmax.f32 %v739, %v687
        %v744 = vmax.f32 %v740, %v690
        %v745 = vmax.f32 %v741, %v695
        %v746 = vmax.f32 %v742, %v698
        %v747 = vmax.f32 %v743, %v703
        %v748 = vmax.f32 %v744, %v706
        %v749 = vmax.f32 %v745, %v711
        %v750 = vmax.f32 %v746, %v714
        %v751 = vmax.f32 %v747, %v719
        %v752 = vmax.f32 %v748, %v722
        %v753 = vmax.f32 %v749, %v750
        %v754 = vmax.f32 %v751, %v752
        %v755 = vmax.f32 %v753, %v754
        %v756 = vrot.slane %v755, 4
        %v757 = vmax.f32 %v755, %v756
        %v758 = vrot.slane %v757, 2
        %v759 = vmax.f32 %v757, %v758
        %v760 = vrot.slane %v759, 1
        %v761 = vmax.f32 %v759, %v760
        %v762 = vsub.f32 %v599, %v761
        %v763 = vsub.f32 %v602, %v761
        %v764 = vsub.f32 %v607, %v761
        %v765 = vsub.f32 %v610, %v761
        %v766 = vsub.f32 %v615, %v761
        %v767 = vsub.f32 %v618, %v761
        %v768 = vsub.f32 %v623, %v761
        %v769 = vsub.f32 %v626, %v761
        %v770 = vsub.f32 %v631, %v761
        %v771 = vsub.f32 %v634, %v761
        %v772 = vsub.f32 %v639, %v761
        %v773 = vsub.f32 %v642, %v761
        %v774 = vsub.f32 %v647, %v761
        %v775 = vsub.f32 %v650, %v761
        %v776 = vsub.f32 %v655, %v761
        %v777 = vsub.f32 %v658, %v761
        %v778 = vsub.f32 %v663, %v761
        %v779 = vsub.f32 %v666, %v761
        %v780 = vsub.f32 %v671, %v761
        %v781 = vsub.f32 %v674, %v761
        %v782 = vsub.f32 %v679, %v761
        %v783 = vsub.f32 %v682, %v761
        %v784 = vsub.f32 %v687, %v761
        %v785 = vsub.f32 %v690, %v761
        %v786 = vsub.f32 %v695, %v761
        %v787 = vsub.f32 %v698, %v761
        %v788 = vsub.f32 %v703, %v761
        %v789 = vsub.f32 %v706, %v761
        %v790 = vsub.f32 %v711, %v761
        %v791 = vsub.f32 %v714, %v761
        %v792 = vsub.f32 %v719, %v761
        %v793 = vsub.f32 %v722, %v761
        %v794 = vmul.f32 %v762, 1.442695
        %v795 = vpow.pop %v794
        %v796 = vmul.f32 %v763, 1.442695
        %v797 = vpow.pop %v796
        %v798 = vmul.f32 %v764, 1.442695
        %v799 = vpow.pop %v798
        %v800 = vmul.f32 %v765, 1.442695
        %v801 = vpow.pop %v800
        %v802 = vmul.f32 %v766, 1.442695
        %v803 = vpow.pop %v802
        %v804 = vmul.f32 %v767, 1.442695
        %v805 = vpow.pop %v804
        %v806 = vmul.f32 %v768, 1.442695
        %v807 = vpow.pop %v806
        %v808 = vmul.f32 %v769, 1.442695
        %v809 = vpow.pop %v808
        %v810 = vmul.f32 %v770, 1.442695
        %v811 = vpow.pop %v810
        %v812 = vmul.f32 %v771, 1.442695
        %v813 = vpow.pop %v812
        %v814 = vmul.f32 %v772, 1.442695
        %v815 = vpow.pop %v814
        %v816 = vmul.f32 %v773, 1.442695
        %v817 = vpow.pop %v816
        %v818 = vmul.f32 %v774, 1.442695
        %v819 = vpow.pop %v818
        %v820 = vmul.f32 %v775, 1.442695
        %v821 = vpow.pop %v820
        %v822 = vmul.f32 %v776, 1.442695
        %v823 = vpow.pop %v822
        %v824 = vmul.f32 %v777, 1.442695
        %v825 = vpow.pop %v824
        %v826 = vmul.f32 %v778, 1.442695
        %v827 = vpow.pop %v826
        %v828 = vmul.f32 %v779, 1.442695
        %v829 = vpow.pop %v828
        %v830 = vmul.f32 %v780, 1.442695
        %v831 = vpow.pop %v830
        %v832 = vmul.f32 %v781, 1.442695
        %v833 = vpow.pop %v832
        %v834 = vmul.f32 %v782, 1.442695
        %v835 = vpow.pop %v834
        %v836 = vmul.f32 %v783, 1.442695
        %v837 = vpow.pop %v836
        %v838 = vmul.f32 %v784, 1.442695
        %v839 = vpow.pop %v838
        %v840 = vmul.f32 %v785, 1.442695
        %v841 = vpow.pop %v840
        %v842 = vmul.f32 %v786, 1.442695
        %v843 = vpow.pop %v842
        %v844 = vmul.f32 %v787, 1.442695
        %v845 = vpow.pop %v844
        %v846 = vmul.f32 %v788, 1.442695
        %v847 = vpow.pop %v846
        %v848 = vmul.f32 %v789, 1.442695
        %v849 = vpow.pop %v848
        %v850 = vmul.f32 %v790, 1.442695
        %v851 = vpow.pop %v850
        %v852 = vmul.f32 %v791, 1.442695
        %v853 = vpow.pop %v852
        %v854 = vmul.f32 %v792, 1.442695
        %v855 = vpow.pop %v854
        %v856 = vmul.f32 %v793, 1.442695
        %v857 = vpow.pop %v856
        %v858 = vadd.f32 %v795, %v797
        %v859 = vadd.f32 %v858, %v799
        %v860 = vadd.f32 %v859, %v801
        %v861 = vadd.f32 %v860, %v803
        %v862 = vadd.f32 %v861, %v805
        %v863 = vadd.f32 %v862, %v807
        %v864 = vadd.f32 %v863, %v809
        %v865 = vadd.f32 %v864, %v811
        %v866 = vadd.f32 %v865, %v813
        %v867 = vadd.f32 %v866, %v815
        %v868 = vadd.f32 %v867, %v817
        %v869 = vadd.f32 %v868, %v819
        %v870 = vadd.f32 %v869, %v821
        %v871 = vadd.f32 %v870, %v823
        %v872 = vadd.f32 %v871, %v825
        %v873 = vadd.f32 %v872, %v827
        %v874 = vadd.f32 %v873, %v829
        %v875 = vadd.f32 %v874, %v831
        %v876 = vadd.f32 %v875, %v833
        %v877 = vadd.f32 %v876, %v835
        %v878 = vadd.f32 %v877, %v837
        %v879 = vadd.f32 %v878, %v839
        %v880 = vadd.f32 %v879, %v841
        %v881 = vadd.f32 %v880, %v843
        %v882 = vadd.f32 %v881, %v845
        %v883 = vadd.f32 %v882, %v847
        %v884 = vadd.f32 %v883, %v849
        %v885 = vadd.f32 %v884, %v851
        %v886 = vadd.f32 %v885, %v853
        %v887 = vadd.f32 %v886, %v855
        %v888 = vadd.f32 %v887, %v857
        %v889 = vrot.slane %v888, 4
        %v890 = vadd.f32 %v888, %v889
        %v891 = vrot.slane %v890, 2
        %v892 = vadd.f32 %v890, %v891
        %v893 = vrot.slane %v892, 1
        %v894 = vadd.f32 %v892, %v893
        %v895 = vrcp.pop %v894
        %v896 = vpack.c.bf16 %v797, %v795
        %v897 = vpack.c.bf16 %v801, %v799
        %v898 = vpack.c.bf16 %v805, %v803
        %v899 = vpack.c.bf16 %v809, %v807
        %v900 = vpack.c.bf16 %v813, %v811
        %v901 = vpack.c.bf16 %v817, %v815
        %v902 = vpack.c.bf16 %v821, %v819
        %v903 = vpack.c.bf16 %v825, %v823
        %v904 = vpack.c.bf16 %v829, %v827
        %v905 = vpack.c.bf16 %v833, %v831
        %v906 = vpack.c.bf16 %v837, %v835
        %v907 = vpack.c.bf16 %v841, %v839
        %v908 = vpack.c.bf16 %v845, %v843
        %v909 = vpack.c.bf16 %v849, %v847
        %v910 = vpack.c.bf16 %v853, %v851
        %v911 = vpack.c.bf16 %v857, %v855
        %v916 = vunpack.c.l.b16 %v463
        %v917 = vunpack.c.h.b16 %v463
        %v918 = vunpack.c.l.b16 %v464
        %v919 = vunpack.c.h.b16 %v464
        %v920 = vunpack.c.l.b16 %v465
        %v921 = vunpack.c.h.b16 %v465
        %v922 = vunpack.c.l.b16 %v466
        %v923 = vunpack.c.h.b16 %v466
        %v924 = vpack.c.b16 %v918, %v916
        %v925 = vpack.c.b16 %v919, %v917
        %v926 = vpack.c.b16 %v922, %v920
        %v927 = vpack.c.b16 %v923, %v921
        %932 = vmatprep.subr.bf16.mxu0 0
        %933 = vmatpush1.bf16.msra.mxu0 %v903
        %934 = vmatprep.subr.bf16.mxu0 0
        %935 = vmatpush1.bf16.msra.mxu0 %v902
        %936 = vmatprep.subr.bf16.mxu0 0
        %937 = vmatpush1.bf16.msra.mxu0 %v901
        %938 = vmatprep.subr.bf16.mxu0 0
        %939 = vmatpush1.bf16.msra.mxu0 %v900
        %940 = vmatprep.subr.bf16.mxu0 0
        %941 = vmatpush1.bf16.msra.mxu0 %v899
        %942 = vmatprep.subr.bf16.mxu0 0
        %943 = vmatpush1.bf16.msra.mxu0 %v898
        %944 = vmatprep.subr.bf16.mxu0 0
        %945 = vmatpush1.bf16.msra.mxu0 %v897
        %946 = vmatprep.subr.bf16.mxu0 0
        %947 = vmatpush1.bf16.msra.mxu0 %v896
        %948 = vmatprep.subr.bf16.mxu0 0
        %949 = vmatpush2.bf16.msra.mxu0 %v911
        %950 = vmatprep.subr.bf16.mxu0 0
        %951 = vmatpush2.bf16.msra.mxu0 %v910
        %952 = vmatprep.subr.bf16.mxu0 0
        %953 = vmatpush2.bf16.msra.mxu0 %v909
        %954 = vmatprep.subr.bf16.mxu0 0
        %955 = vmatpush2.bf16.msra.mxu0 %v908
        %956 = vmatprep.subr.bf16.mxu0 0
        %957 = vmatpush2.bf16.msra.mxu0 %v907
        %958 = vmatprep.subr.bf16.mxu0 0
        %959 = vmatpush2.bf16.msra.mxu0 %v906
        %960 = vmatprep.subr.bf16.mxu0 0
        %961 = vmatpush2.bf16.msra.mxu0 %v905
        %962 = vmatprep.subr.bf16.mxu0 0
        %963 = vmatpush2.bf16.msra.mxu0 %v904
        %964 = vmatprep.mubr.bf16.mxu0 %v925
        %965 = vmatmul.mubr.bf16.gmra.mxu0 %v924
        %v966 = vpop.f32.mrf.mxu0
        %v967 = vadd.f32 0.0, %v966
        %v968 = vpop.f32.mrf.mxu0
        %v969 = vpop.f32.mrf.mxu0
        %v970 = vadd.f32 0.0, %v969
        %v971 = vpop.f32.mrf.mxu0
        %972 = vmatprep.mubr.bf16.mxu0 %v927
        %973 = vmatmul.mubr.bf16.gmra.mxu0 %v926
        %v974 = vpop.f32.mrf.mxu0
        %v975 = vadd.f32 0.0, %v974
        %v976 = vpop.f32.mrf.mxu0
        %v977 = vpop.f32.mrf.mxu0
        %v978 = vadd.f32 0.0, %v977
        %v979 = vpop.f32.mrf.mxu0
        %980 = vdwg.mxu0
        %s981 = smul.addr %s455, 8
        %s982 = scalar_lea.vmem %s180, %s981 [#allocation3]
        %v983 = vld [vmem:[%s982] sm:$0xff]
        %v984 = vld [vmem:[%s982 + $0x10] sm:$0xff]
        %v985 = vld [vmem:[%s982 + $0x20] sm:$0xff]
        %v986 = vld [vmem:[%s982 + $0x30] sm:$0xff]
        %v987 = vmul.f32 %v967, %v895
        %v988 = vmul.f32 %v970, %v895
        %v989 = vmul.f32 %v975, %v895
        %v990 = vmul.f32 %v978, %v895
        %v991 = vadd.f32 %v983, %v987
        %v992 = vadd.f32 %v984, %v988
        %v993 = vadd.f32 %v985, %v989
        %v994 = vadd.f32 %v986, %v990
        %995 = vst [vmem:[%s202] sm:$0xff] %v991
        %996 = vst [vmem:[%s202 + $0x8] sm:$0xff] %v992
        %997 = vst [vmem:[%s202 + $0x10] sm:$0xff] %v993
        %998 = vst [vmem:[%s202 + $0x18] sm:$0xff] %v994
        %s999 = sand.u32 %s110, 1
        %s1000 = scalar_lea.sflag [#allocation5], %s999
        %s1001 = sand.u32 %s110, 1
        %s1002 = smul.addr %s1001, 32
        %s1003 = scalar_lea.vmem [#allocation6], %s1002
        // Predicated region
        $region41: #{tpu_custom_call.1} parent=31 // pred_check
          %p1004 = pneg %p120
        $region42: #{tpu_custom_call.1} parent=31 // pred_check_branch
          %1006 = sbr.rel (%p1004) target = $region44
        $region43: #{tpu_custom_call.1} parent=31 // pred_region
          %s1008 = ssub.s32 512, 512
          %1009 = vsyncadd %s1000, %s1008
          %s1010 = smul.addr %s24, 8
          %s1011 = sadd.s32 %s25, %s1010
          %s1012 = smul.addr %s1011, 128
          %s1013 = scalar_lea.hbm %s3, %s1012
          %s1014 = sshll.u32 %s1003, 4
          %s1015 = int_to_ptr.vmem [resolvable:$true] %s1014
          %1020 = dma.vmem_to_hbm [thread:$0]  %s1015, 512, %s1013, %s1000, 128, 256, 8
        $region44: #{tpu_custom_call.1} parent=31 // pred_fallthru
          _
      $region32: #{tpu_custom_call.1} parent=5 // pred_fallthru
        _
      %p1021 = scmp.le.s32.totalorder 2, %s15
      // Predicated region
      $region45: #{tpu_custom_call.1} parent=5 // pred_check
        %p1022 = pneg %p1021
      $region46: #{tpu_custom_call.1} parent=5 // pred_check_branch
        %1024 = sbr.rel (%p1022) target = $region48
      $region47: #{tpu_custom_call.1} parent=5 // pred_region
        %s1025 = ssub.s32 %s15, 2
        // Predicated region
        $region49: #{tpu_custom_call.1} parent=47 // pred_check
          %p1026 = pneg %p126
        $region50: #{tpu_custom_call.1} parent=47 // pred_check_branch
          %1028 = sbr.rel (%p1026) target = $region52
        $region51: #{tpu_custom_call.1} parent=47 // pred_region
          %s1029 = sand.u32 %s111, 1
          %s1030 = scalar_lea.sflag [#allocation5], %s1029
          %s1031 = sand.u32 %s111, 1
          %s1032 = smul.addr %s1031, 32
          %s1033 = scalar_lea.vmem [#allocation6], %s1032
          %1034 = dma.done %s1030, 512
        $region52: #{tpu_custom_call.1} parent=47 // pred_fallthru
          _
      $region48: #{tpu_custom_call.1} parent=5 // pred_fallthru
        _
    $region6: #{tpu_custom_call.1} parent=1 // loop_footer
      %s19 = sadd.s32 1, %s15
    $region7: #{tpu_custom_call.1} parent=1 // loop_footer_branch
      %14 = sbr.rel target = $region3
    $region8: #{tpu_custom_call.1} parent=1 // loop_exit
      _
    %1035 = vsyncpa [#allocation4], 1
    %s1036 = scalar_lea.sflag [#allocation4], 1
    %1037 = vsyncpa %s1036, 1
    %1038 = vsyncpa [#allocation5], 1
    %s1039 = scalar_lea.sflag [#allocation5], 1
    %1040 = vsyncpa %s1039, 1

</llo_original>
